<compile_context>
chip_gen: v6e
topology: v6e:2x2x1
jax: 0.10.0
libtpu: 0.0.40
codegen_flags: <defaults>
</compile_context>

<pallas_src>
import functools

import jax
import jax.numpy as jnp
from jax import lax
from jax.experimental import pallas as pl
from jax.experimental.pallas import tpu as pltpu


def _round_up(x, m):
    return ((x + m - 1) // m) * m


def _device_tuning():
    """(num_tensorcores_per_device, vmem_limit_bytes) from the device kind."""
    kind = ""
    try:
        kind = jax.devices()[0].device_kind.lower()
    except Exception:
        pass
    if "v7" in kind:
        # 2 TCs per chip, 64 MiB VMEM per TC -> keep a conservative clamp.
        return 2, 40 * 1024 * 1024
    if ("v6" in kind) or ("v5e" in kind) or ("v5 lite" in kind) or ("v5lite" in kind):
        # Single TC, 128 MiB physical VMEM -> allow bigger blocks.
        return 1, 80 * 1024 * 1024
    # Unknown / older parts: stay conservative.
    return 1, 32 * 1024 * 1024


def _label_smooth_ce_kernel(x_ref, t_ref, out_ref, *,
                            epsilon, num_classes, n_valid, tile_n,
                            tiles_per_split, has_pad):
    s = pl.program_id(0)          # TensorCore split (parallel)
    i = pl.program_id(1)          # batch-tile reduction within a split

    @pl.when(i == 0)
    def _():
        out_ref[...] = jnp.zeros_like(out_ref)

    x = x_ref[...].astype(jnp.float32)       # (C, tile_n): classes on sublanes
    t = t_ref[...]                           # (1, tile_n) int32, lane-major

    # log-softmax pieces; log_probs / one_hot / smoothed never materialize.
    m = jnp.max(x, axis=0, keepdims=True)                              # (1, tile_n)
    shifted = x - m
    lse = jnp.log(jnp.sum(jnp.exp(shifted), axis=0, keepdims=True))    # (1, tile_n)

    cls = lax.broadcasted_iota(jnp.int32, shifted.shape, 0)
    picked = jnp.sum(jnp.where(cls == t, shifted, 0.0),
                     axis=0, keepdims=True)                            # (1, tile_n)
    col_sum = jnp.sum(shifted, axis=0, keepdims=True)                  # (1, tile_n)

    # per-sample loss = lse - (1-eps)*picked - (eps/C)*sum_c(shifted)
    per_col = (lse - (1.0 - epsilon) * picked
               - (epsilon / num_classes) * col_sum)                    # (1, tile_n)

    if has_pad:
        base = (s * tiles_per_split + i) * tile_n
        no_tail = base + tile_n <= n_valid

        @pl.when(no_tail)
        def _():
            out_ref[...] += jnp.sum(per_col, axis=1, keepdims=True)

        @pl.when(jnp.logical_not(no_tail))
        def _():
            col = lax.broadcasted_iota(jnp.int32, per_col.shape, 1) + base
            masked = jnp.where(col < n_valid, per_col, 0.0)
            out_ref[...] += jnp.sum(masked, axis=1, keepdims=True)
    else:
        out_ref[...] += jnp.sum(per_col, axis=1, keepdims=True)


def cross_entropy_label_smooth(inputs, targets, *, num_classes, epsilon,
                               tile_n=None, num_splits=None):
    """inputs: (N, C) float logits; targets: (N,) int class indices -> scalar loss."""
    n, c = inputs.shape
    assert c == num_classes
    itemsize = jnp.dtype(inputs.dtype).itemsize
    # TODO(synk): vocab-scale C (>=32K) would need a class-axis grid with a
    # streaming/online logsumexp; not implemented (C is small for this module).

    n_tc, vmem_limit = _device_tuning()

    lane = 128
    if tile_n is None:
        c_sub = _round_up(c, 8)
        # VMEM per batch column: double-buffered (C, tile_n) logits block in
        # the input dtype, double-buffered lane-major targets (sublanes pad to
        # 8), plus ~8 whole-block f32 temporaries Mosaic may materialize.
        per_col = 2 * c * itemsize + 2 * 8 * 4 + 8 * c_sub * 4
        tile_n = int((vmem_limit * 0.55) // per_col)
        tile_n = min(tile_n, 32768, _round_up(n, lane))
    tile_n = max(lane, (tile_n // lane) * lane)

    n_tiles_min = pl.cdiv(n, tile_n)
    if num_splits is None:
        # Split the batch reduction across TensorCores only on multi-TC parts
        # (v7x) and only when each split still gets >=2 tiles of real work.
        num_splits = 2 if (n_tc >= 2 and n_tiles_min >= 4) else 1

    padded_n = _round_up(n, num_splits * tile_n)
    tiles_per_split = padded_n // (num_splits * tile_n)
    has_pad = padded_n != n

    # Layout plumbing in the wrapper: classes on sublanes, batch on lanes.
    x_t = inputs.T                                     # (C, N)
    t_row = targets.astype(jnp.int32).reshape(1, n)    # (1, N) lane-major
    if has_pad:
        pad = padded_n - n
        x_t = jnp.pad(x_t, ((0, 0), (0, pad)))
        t_row = jnp.pad(t_row, ((0, 0), (0, pad)))

    kernel = functools.partial(
        _label_smooth_ce_kernel,
        epsilon=float(epsilon),
        num_classes=int(num_classes),
        n_valid=int(n),
        tile_n=int(tile_n),
        tiles_per_split=int(tiles_per_split),
        has_pad=bool(has_pad),
    )

    partial_sums = pl.pallas_call(
        kernel,
        out_shape=jax.ShapeDtypeStruct((num_splits, 1), jnp.float32),
        grid_spec=pltpu.PrefetchScalarGridSpec(
            num_scalar_prefetch=0,
            grid=(num_splits, tiles_per_split),
            in_specs=[
                pl.BlockSpec((c, tile_n),
                             lambda s, i, tps=tiles_per_split: (0, s * tps + i)),
                pl.BlockSpec((1, tile_n),
                             lambda s, i, tps=tiles_per_split: (0, s * tps + i)),
            ],
            out_specs=pl.BlockSpec((1, 1), lambda s, i: (s, 0)),
        ),
        compiler_params=pltpu.CompilerParams(
            dimension_semantics=("parallel", "arbitrary"),
            vmem_limit_bytes=int(vmem_limit),
        ),
    )(x_t, t_row)

    # .mean(0).sum() == total_sum / N   (sum per-core partials in the wrapper)
    return jnp.sum(partial_sums) / jnp.float32(n)


def _reference(inputs, targets, num_classes, epsilon):
    log_probs = jax.nn.log_softmax(inputs.astype(jnp.float32), axis=1)
    one_hot = jax.nn.one_hot(targets, num_classes, dtype=jnp.float32)
    smoothed = (1.0 - epsilon) * one_hot + epsilon / num_classes
    return (-smoothed * log_probs).mean(0).sum()


if __name__ == "__main__":
    epsilon = 0.1
    key = jax.random.PRNGKey(0)
    k1, k2, k3, k4 = jax.random.split(key, 4)

    # Small case matching the module convention: (N, num_classes) logits.
    num_classes = 32
    batch = 8
    logits = jax.random.normal(k1, (batch, num_classes), dtype=jnp.float32)
    targets = jax.random.randint(k2, (batch,), 0, num_classes, dtype=jnp.int32)

    loss = cross_entropy_label_smooth(
        logits, targets, num_classes=num_classes, epsilon=epsilon)
    loss = jax.block_until_ready(loss)
    ref = _reference(logits, targets, num_classes, epsilon)
    assert jnp.allclose(loss, ref, rtol=5e-5, atol=5e-5), (loss, ref)

    # Larger, non-aligned batch at the module's typical small C: exercises the
    # padded/masked tail with the default (large single tile) tiling.
    n2, c2 = 4000, 21
    logits2 = jax.random.normal(k3, (n2, c2), dtype=jnp.float32)
    targets2 = jax.random.randint(k4, (n2,), 0, c2, dtype=jnp.int32)
    loss2 = cross_entropy_label_smooth(
        logits2, targets2, num_classes=c2, epsilon=epsilon)
    loss2 = jax.block_until_ready(loss2)
    ref2 = _reference(logits2, targets2, c2, epsilon)
    assert jnp.allclose(loss2, ref2, rtol=5e-5, atol=5e-5), (loss2, ref2)

    # Force multi-tile + 2-way split to exercise the pipelined reduction and
    # the tail-only masking path regardless of which chip this runs on.
    loss3 = cross_entropy_label_smooth(
        logits2, targets2, num_classes=c2, epsilon=epsilon,
        tile_n=512, num_splits=2)
    loss3 = jax.block_until_ready(loss3)
    assert jnp.allclose(loss3, ref2, rtol=5e-5, atol=5e-5), (loss3, ref2)

    print("KERNEL_OK")
</pallas_src>

<mosaic_0001>
module attributes {stable_mosaic.version = 11 : i64} {
  func.func @_label_smooth_ce_kernel(%arg0: i32, %arg1: i32, %arg2: memref<32x128xf32, #tpu.memory_space<vmem>>, %arg3: memref<1x128xi32, #tpu.memory_space<vmem>>, %arg4: memref<1x1xf32, #tpu.memory_space<vmem>>) attributes {dimension_semantics = [#tpu.dimension_semantics<parallel>, #tpu.dimension_semantics<arbitrary>], iteration_bounds = array<i64: 1, 1>, scalar_prefetch = 0 : i64, scratch_operands = 0 : i64, tpu.core_type = #tpu.core_type<tc>, window_params = [{transform_indices = @transform_0, window_bounds = array<i64: 32, 128>}, {transform_indices = @transform_1, window_bounds = array<i64: 1, 128>}, {transform_indices = @transform_2, window_bounds = array<i64: 1, 1>}]} {
    %c0_i32 = arith.constant 0 : i32
    %0 = arith.cmpi eq, %arg1, %c0_i32 : i32
    %1 = arith.extui %0 : i1 to i32
    %c0_i32_0 = arith.constant 0 : i32
    %2 = arith.cmpi ne, %1, %c0_i32_0 : i32
    scf.if %2 {
      %cst_13 = arith.constant 0.000000e+00 : f32
      %38 = vector.broadcast %cst_13 : f32 to vector<1x1xf32>
      %c0_14 = arith.constant 0 : index
      %c0_15 = arith.constant 0 : index
      %39 = vector.load %arg4[%c0_14, %c0_15] : memref<1x1xf32, #tpu.memory_space<vmem>>, vector<1x1xf32>
      tpu.vector_store %arg4[%c0_14, %c0_15], %38 {strides = array<i32>} : memref<1x1xf32, #tpu.memory_space<vmem>>, vector<1x1xf32>,
    } else {
    }
    %c0 = arith.constant 0 : index
    %c0_1 = arith.constant 0 : index
    %3 = vector.load %arg2[%c0, %c0_1] : memref<32x128xf32, #tpu.memory_space<vmem>>, vector<32x128xf32>
    %c0_2 = arith.constant 0 : index
    %c0_3 = arith.constant 0 : index
    %4 = vector.load %arg3[%c0_2, %c0_3] : memref<1x128xi32, #tpu.memory_space<vmem>>, vector<1x128xi32>
    %cst = arith.constant dense<0xFF800000> : vector<128xf32>
    %5 = vector.multi_reduction <maximumf>, %3, %cst [0] : vector<32x128xf32> to vector<128xf32>
    %6 = vector.shape_cast %5 : vector<128xf32> to vector<1x128xf32>
    %7 = vector.broadcast %6 : vector<1x128xf32> to vector<32x128xf32>
    %8 = arith.subf %3, %7 : vector<32x128xf32>
    %9 = math.exp %8 : vector<32x128xf32>
    %cst_4 = arith.constant dense<0.000000e+00> : vector<128xf32>
    %10 = vector.multi_reduction <add>, %9, %cst_4 [0] : vector<32x128xf32> to vector<128xf32>
    %11 = vector.shape_cast %10 : vector<128xf32> to vector<1x128xf32>
    %12 = math.log %11 : vector<1x128xf32>
    %13 = tpu.iota {dimensions = array<i32: 0>} : vector<32x128xi32>
    %14 = vector.broadcast %4 : vector<1x128xi32> to vector<32x128xi32>
    %15 = arith.cmpi eq, %13, %14 : vector<32x128xi32>
    %cst_5 = arith.constant 0.000000e+00 : f32
    %16 = vector.broadcast %cst_5 : f32 to vector<32x128xf32>
    %17 = arith.select %15, %8, %16 : vector<32x128xi1>, vector<32x128xf32>
    %cst_6 = arith.constant dense<0.000000e+00> : vector<128xf32>
    %18 = vector.multi_reduction <add>, %17, %cst_6 [0] : vector<32x128xf32> to vector<128xf32>
    %19 = vector.shape_cast %18 : vector<128xf32> to vector<1x128xf32>
    %cst_7 = arith.constant dense<0.000000e+00> : vector<128xf32>
    %20 = vector.multi_reduction <add>, %8, %cst_7 [0] : vector<32x128xf32> to vector<128xf32>
    %21 = vector.shape_cast %20 : vector<128xf32> to vector<1x128xf32>
    %cst_8 = arith.constant 0.899999976 : f32
    %22 = vector.broadcast %cst_8 : f32 to vector<1x128xf32>
    %23 = arith.mulf %22, %19 : vector<1x128xf32>
    %24 = arith.subf %12, %23 : vector<1x128xf32>
    %cst_9 = arith.constant 3.125000e-03 : f32
    %25 = vector.broadcast %cst_9 : f32 to vector<1x128xf32>
    %26 = arith.mulf %25, %21 : vector<1x128xf32>
    %27 = arith.subf %24, %26 : vector<1x128xf32>
    %c1_i32 = arith.constant 1 : i32
    %28 = arith.muli %arg0, %c1_i32 : i32
    %29 = arith.addi %28, %arg1 : i32
    %c128_i32 = arith.constant 128 : i32
    %30 = arith.muli %29, %c128_i32 : i32
    %c128_i32_10 = arith.constant 128 : i32
    %31 = arith.addi %30, %c128_i32_10 : i32
    %c8_i32 = arith.constant 8 : i32
    %32 = arith.cmpi sle, %31, %c8_i32 : i32
    %33 = arith.extui %32 : i1 to i32
    %c0_i32_11 = arith.constant 0 : i32
    %34 = arith.cmpi ne, %33, %c0_i32_11 : i32
    scf.if %34 {
      %c0_13 = arith.constant 0 : index
      %c0_14 = arith.constant 0 : index
      %38 = vector.load %arg4[%c0_13, %c0_14] : memref<1x1xf32, #tpu.memory_space<vmem>>, vector<1x1xf32>
      %cst_15 = arith.constant dense<0.000000e+00> : vector<1xf32>
      %39 = vector.multi_reduction <add>, %27, %cst_15 [1] : vector<1x128xf32> to vector<1xf32>
      %40 = vector.shape_cast %39 : vector<1xf32> to vector<1x1xf32>
      %41 = arith.addf %38, %40 : vector<1x1xf32>
      %c0_16 = arith.constant 0 : index
      %c0_17 = arith.constant 0 : index
      %42 = vector.load %arg4[%c0_16, %c0_17] : memref<1x1xf32, #tpu.memory_space<vmem>>, vector<1x1xf32>
      tpu.vector_store %arg4[%c0_16, %c0_17], %41 {strides = array<i32>} : memref<1x1xf32, #tpu.memory_space<vmem>>, vector<1x1xf32>,
    } else {
    }
    %true = arith.constant true
    %35 = arith.xori %32, %true : i1
    %36 = arith.extui %35 : i1 to i32
    %c0_i32_12 = arith.constant 0 : i32
    %37 = arith.cmpi ne, %36, %c0_i32_12 : i32
    scf.if %37 {
      %38 = tpu.iota {dimensions = array<i32: 1>} : vector<1x128xi32>
      %39 = vector.broadcast %30 : i32 to vector<1x128xi32>
      %40 = arith.addi %38, %39 : vector<1x128xi32>
      %c8_i32_13 = arith.constant 8 : i32
      %41 = vector.broadcast %c8_i32_13 : i32 to vector<1x128xi32>
      %42 = arith.cmpi slt, %40, %41 : vector<1x128xi32>
      %cst_14 = arith.constant 0.000000e+00 : f32
      %43 = vector.broadcast %cst_14 : f32 to vector<1x128xf32>
      %44 = arith.select %42, %27, %43 : vector<1x128xi1>, vector<1x128xf32>
      %c0_15 = arith.constant 0 : index
      %c0_16 = arith.constant 0 : index
      %45 = vector.load %arg4[%c0_15, %c0_16] : memref<1x1xf32, #tpu.memory_space<vmem>>, vector<1x1xf32>
      %cst_17 = arith.constant dense<0.000000e+00> : vector<1xf32>
      %46 = vector.multi_reduction <add>, %44, %cst_17 [1] : vector<1x128xf32> to vector<1xf32>
      %47 = vector.shape_cast %46 : vector<1xf32> to vector<1x1xf32>
      %48 = arith.addf %45, %47 : vector<1x1xf32>
      %c0_18 = arith.constant 0 : index
      %c0_19 = arith.constant 0 : index
      %49 = vector.load %arg4[%c0_18, %c0_19] : memref<1x1xf32, #tpu.memory_space<vmem>>, vector<1x1xf32>
      tpu.vector_store %arg4[%c0_18, %c0_19], %48 {strides = array<i32>} : memref<1x1xf32, #tpu.memory_space<vmem>>, vector<1x1xf32>,
    } else {
    }
    return
  }
  func.func @transform_0(%arg0: i32, %arg1: i32) -> (i32, i32) {
    %c1_i32 = arith.constant 1 : i32
    %0 = arith.muli %arg0, %c1_i32 : i32
    %1 = arith.addi %0, %arg1 : i32
    %c0_i32 = arith.constant 0 : i32
    %c0_i32_0 = arith.constant 0 : i32
    return %c0_i32, %1 : i32, i32
  }
  func.func @transform_1(%arg0: i32, %arg1: i32) -> (i32, i32) {
    %c1_i32 = arith.constant 1 : i32
    %0 = arith.muli %arg0, %c1_i32 : i32
    %1 = arith.addi %0, %arg1 : i32
    %c0_i32 = arith.constant 0 : i32
    %c0_i32_0 = arith.constant 0 : i32
    return %c0_i32, %1 : i32, i32
  }
  func.func @transform_2(%arg0: i32, %arg1: i32) -> (i32, i32) {
    %c0_i32 = arith.constant 0 : i32
    %c0_i32_0 = arith.constant 0 : i32
    return %arg0, %c0_i32 : i32, i32
  }
}

</mosaic_0001>

<llo_original>
// kernel: tpu_custom_call.1
$region0: #{tpu_custom_call.1}
  #allocation0 [shape = 'u32[]', space=smem, size = 0x4, offset = 0x4, fixed_abs, tag = 'smem constant byte address 0x4 - core index']
  #allocation1 [shape = 'u32[144,128]{1,0:T(1,128)}', space=vmem, size = 0x12000, scoped, tag = 'internal scratch']
  %s0 = inlined_call_operand.hbm [shape: f32[32,128], index: 0, kind: input, shape index: {}]
  %s1 = inlined_call_operand.vmem [shape: s32[1,128], index: 1, kind: input, shape index: {}]
  %s2 = inlined_call_operand.hbm [shape: f32[1,1], index: 2, kind: output, shape index: {}]
  %s3 = sld [smem:[#allocation0]]
  $region34: #{tpu_custom_call.1} parent=0
    _
  %s5 = ssub.s32 1, %s3
  %s6 = scalar_select 0, %s5, %s3
  $region1: #{tpu_custom_call.1} parent=0
    #allocation2 [shape = 'u8[16384]{0}', space=vmem, size = 0x4000, scoped, tag = 'input window, operand 0, single buffered']
    #allocation3 [shape = 's32[1]{0}', space=sflag, size = 0x4, scoped, tag = 'scoped memory for tpu_custom_call.1']
    #allocation4 [shape = 's32[1]{0}', space=sflag, size = 0x4, scoped, tag = 'scoped memory for tpu_custom_call.1']
    #allocation5 [shape = 'u8[512]{0}', space=vmem, size = 0x400, scoped, tag = 'output window, operand 0, single buffered']
    %7 = vsyncpa [#allocation3], 0
    %8 = vsyncpa [#allocation4], 0
    // Predicated region
    $region2: #{tpu_custom_call.1} parent=1 // pred_check
      _
    $region3: #{tpu_custom_call.1} parent=1 // pred_check_branch
      %10 = sbr.rel (0) target = $region5
    $region4: #{tpu_custom_call.1} parent=1 // pred_region
      %s11 = sadd.s32 0, 0
      %s13 = ssub.s32 512, 512
      %14 = vsyncadd [#allocation3], %s13
      %s15 = smul.addr %s11, 128
      %s16 = scalar_lea.hbm %s0, %s15
      %s17 = sshll.u32 [#allocation2], 4
      %s18 = int_to_ptr.vmem [resolvable:$true] %s17
      %23 = dma.hbm_to_vmem [thread:$0]  %s16, 512, %s18, [#allocation3], 128, 128, 8
    $region5: #{tpu_custom_call.1} parent=1 // pred_fallthru
      _
    // Predicated region
    $region6: #{tpu_custom_call.1} parent=1 // pred_check
      _
    $region7: #{tpu_custom_call.1} parent=1 // pred_check_branch
      %25 = sbr.rel (0) target = $region9
    $region8: #{tpu_custom_call.1} parent=1 // pred_region
      %s26 = sadd.s32 0, 0
      %p27 = scmp.lt.s32.totalorder %s26, 0
      %s28 = scalar_select %p27, %s26, 0
      %s29 = scalar_lea.vmem %s1, %s28
      %s30 = sadd.s32 0, 0
    $region9: #{tpu_custom_call.1} parent=1 // pred_fallthru
      _
    // Predicated region
    $region10: #{tpu_custom_call.1} parent=1 // pred_check
      _
    $region11: #{tpu_custom_call.1} parent=1 // pred_check_branch
      %32 = sbr.rel (0) target = $region13
    $region12: #{tpu_custom_call.1} parent=1 // pred_region
      %33 = dma.done [#allocation3], 512
    $region13: #{tpu_custom_call.1} parent=1 // pred_fallthru
      _
    %s34 = sadd.s32 0, 0
    %p35 = scmp.lt.s32.totalorder %s34, 0
    %s36 = scalar_select %p35, %s34, 0
    %s37 = scalar_lea.vmem %s1, %s36
    %s38 = sadd.s32 0, 0
    %s39 = sadd.s32 0, 0
    %p40 = scmp.lt.s32.totalorder %s39, 0
    %s41 = scalar_select %p40, %s39, 0
    %s42 = scalar_lea.vmem %s1, %s41
    %s43 = sadd.s32 0, 0
    %p44 = scmp.eq.s32.totalorder 0, 0
    // Predicated region
    $region14: #{tpu_custom_call.1} parent=1 // pred_check
      %p45 = pneg %p44
    $region15: #{tpu_custom_call.1} parent=1 // pred_check_branch
      %47 = sbr.rel (%p45) target = $region17
    $region16: #{tpu_custom_call.1} parent=1 // pred_region
      %vm48 = vcmask 0
      %49 = vst.msk [vmem:[#allocation5] sm:$0x1] %vm48, 0.0
    $region17: #{tpu_custom_call.1} parent=1 // pred_fallthru
      _
    %v50 = vld [vmem:[#allocation2] sm:$0xff]
    %v51 = vld [vmem:[#allocation2 + $0x8] sm:$0xff]
    %v52 = vld [vmem:[#allocation2 + $0x10] sm:$0xff]
    %v53 = vld [vmem:[#allocation2 + $0x18] sm:$0xff]
    %v54 = vld [vmem:[%s42] sm:$0x1]
    %v55 = vmax.f32 %v50, %v51
    %v56 = vmax.f32 %v52, %v53
    %v57 = vmax.f32 %v55, %v56
    %v58 = vrot.slane %v57, 4
    %v59 = vmax.f32 %v57, %v58
    %v60 = vrot.slane %v59, 2
    %v61 = vmax.f32 %v59, %v60
    %v62 = vrot.slane %v61, 1
    %v63 = vmax.f32 %v61, %v62
    %v64 = vsub.f32 %v50, %v63
    %v65 = vsub.f32 %v51, %v63
    %v66 = vsub.f32 %v52, %v63
    %v67 = vsub.f32 %v53, %v63
    %v68 = vmul.f32 %v64, 1.442695
    %v69 = vpow.pop %v68
    %v70 = vmul.f32 %v65, 1.442695
    %v71 = vpow.pop %v70
    %v72 = vmul.f32 %v66, 1.442695
    %v73 = vpow.pop %v72
    %v74 = vmul.f32 %v67, 1.442695
    %v75 = vpow.pop %v74
    %v76 = vadd.f32 %v69, %v71
    %v77 = vadd.f32 %v76, %v73
    %v78 = vadd.f32 %v77, %v75
    %v79 = vrot.slane %v78, 4
    %v80 = vadd.f32 %v78, %v79
    %v81 = vrot.slane %v80, 2
    %v82 = vadd.f32 %v80, %v81
    %v83 = vrot.slane %v82, 1
    %v84 = vadd.f32 %v82, %v83
    %v85 = vlog2.pop %v84
    %v86 = vmul.f32 %v85, 0.6931472
    %v87 = vlaneseq
    %v88 = vshrl.u32 %v87, 7
    %v89 = vadd.s32 %v88, 8
    %v90 = vadd.s32 %v88, 16
    %v91 = vadd.s32 %v88, 24
    %v92 = vlaneseq
    %v93 = vshrl.u32 %v92, 7
    %v94 = vsub.s32 0, %v93
    %v95 = vrot.slane %v54, %v94
    %vm96 = vcmp.eq.s32.totalorder %v88, %v95
    %vm97 = vcmp.eq.s32.totalorder %v89, %v95
    %vm98 = vcmp.eq.s32.totalorder %v90, %v95
    %vm99 = vcmp.eq.s32.totalorder %v91, %v95
    %v100 = vsel %vm96, %v64, 0.0
    %v101 = vsel %vm97, %v65, 0.0
    %v102 = vsel %vm98, %v66, 0.0
    %v103 = vsel %vm99, %v67, 0.0
    %v104 = vadd.f32 %v100, %v101
    %v105 = vadd.f32 %v104, %v102
    %v106 = vadd.f32 %v105, %v103
    %v107 = vrot.slane %v106, 4
    %v108 = vadd.f32 %v106, %v107
    %v109 = vrot.slane %v108, 2
    %v110 = vadd.f32 %v108, %v109
    %v111 = vrot.slane %v110, 1
    %v112 = vadd.f32 %v110, %v111
    %v113 = vadd.f32 %v64, %v65
    %v114 = vadd.f32 %v113, %v66
    %v115 = vadd.f32 %v114, %v67
    %v116 = vrot.slane %v115, 4
    %v117 = vadd.f32 %v115, %v116
    %v118 = vrot.slane %v117, 2
    %v119 = vadd.f32 %v117, %v118
    %v120 = vrot.slane %v119, 1
    %v121 = vadd.f32 %v119, %v120
    %v122 = vmul.f32 %v112, 0.9
    %v123 = vsub.f32 %v86, %v122
    %v124 = vmul.f32 %v121, 0.003125
    %v125 = vsub.f32 %v123, %v124
    %s126 = sadd.s32 0, 0
    %s127 = smul.u32 %s126, 128
    %s128 = sadd.s32 %s127, 128
    %p129 = scmp.le.s32.totalorder %s128, 8
    // Predicated region
    $region18: #{tpu_custom_call.1} parent=1 // pred_check
      %p130 = pneg %p129
    $region19: #{tpu_custom_call.1} parent=1 // pred_check_branch
      %132 = sbr.rel (%p130) target = $region21
    $region20: #{tpu_custom_call.1} parent=1 // pred_region
      %v133 = vld [vmem:[#allocation5] sm:$0x1]
      %134 = vadd.xlane.f32.xlu0 %v125
      %v135 = vpop.xlane.xlu0 %134
      %v136 = vadd.f32 %v133, %v135
      %vm137 = vcmask 0
      %138 = vst.msk [vmem:[#allocation5] sm:$0x1] %vm137, %v136
    $region21: #{tpu_custom_call.1} parent=1 // pred_fallthru
      _
    %p139 = scmp.gt.s32.totalorder %s128, 8
    // Predicated region
    $region22: #{tpu_custom_call.1} parent=1 // pred_check
      %p140 = pneg %p139
    $region23: #{tpu_custom_call.1} parent=1 // pred_check_branch
      %142 = sbr.rel (%p140) target = $region25
    $region24: #{tpu_custom_call.1} parent=1 // pred_region
      %v143 = vlaneseq
      %v144 = vand.u32 %v143, 127
      %v145 = vstv %s127
      %v146 = vadd.s32 %v144, %v145
      %vm147 = vcmp.lt.s32.totalorder %v146, 8
      %v148 = vsel %vm147, %v125, 0.0
      %v149 = vld [vmem:[#allocation5] sm:$0x1]
      %150 = vadd.xlane.f32.xlu0 %v148
      %v151 = vpop.xlane.xlu0 %150
      %v152 = vadd.f32 %v149, %v151
      %vm153 = vcmask 0
      %154 = vst.msk [vmem:[#allocation5] sm:$0x1] %vm153, %v152
    $region25: #{tpu_custom_call.1} parent=1 // pred_fallthru
      _
    // Predicated region
    $region26: #{tpu_custom_call.1} parent=1 // pred_check
      _
    $region27: #{tpu_custom_call.1} parent=1 // pred_check_branch
      %156 = sbr.rel (0) target = $region29
    $region28: #{tpu_custom_call.1} parent=1 // pred_region
      %s158 = ssub.s32 16, 16
      %159 = vsyncadd [#allocation4], %s158
      %s161 = sshll.u32 [#allocation5], 4
      %s162 = int_to_ptr.vmem [resolvable:$true] %s161
      %164 = dma.vmem_to_hbm [thread:$0]  %s162, 16, %s2, [#allocation4]
    $region29: #{tpu_custom_call.1} parent=1 // pred_fallthru
      _
    // Predicated region
    $region30: #{tpu_custom_call.1} parent=1 // pred_check
      _
    $region31: #{tpu_custom_call.1} parent=1 // pred_check_branch
      %166 = sbr.rel (0) target = $region33
    $region32: #{tpu_custom_call.1} parent=1 // pred_region
      %167 = dma.done [#allocation4], 16
    $region33: #{tpu_custom_call.1} parent=1 // pred_fallthru
      _
    %168 = vsyncpa [#allocation3], 1
    %169 = vsyncpa [#allocation4], 1

</llo_original>
